<compile_context>
chip_gen: v6e
topology: v6e:2x2x1
jax: 0.10.0
libtpu: 0.0.40
codegen_flags: <defaults>
</compile_context>

<pallas_src>
import numpy as np
import jax
import jax.numpy as jnp
from jax.experimental import pallas as pl
from jax.experimental.pallas import tpu as pltpu

# ----------------------------------------------------------------------------
# db4 decomposition filters (pywt convention: dec_lo = reversed scaling filter)
# ----------------------------------------------------------------------------
DB4_DEC_LO = np.array(
    [-0.010597401784997278, 0.032883011666982945, 0.030841381835986965,
     -0.18703481171888114, -0.02798376941698385, 0.6308807679295904,
     0.7148465705525415, 0.23037781330885523], dtype=np.float64)
F_LEN = len(DB4_DEC_LO)
# pywt QMF relation: dec_hi[j] = (-1)^(F-1-j) * dec_lo[F-1-j]
DB4_DEC_HI = np.array(
    [((-1.0) ** (F_LEN - 1 - j)) * DB4_DEC_LO[F_LEN - 1 - j] for j in range(F_LEN)],
    dtype=np.float64)


def _round_up(x, m):
    return ((x + m - 1) // m) * m


def _sym_index(i, n):
    """Map extended index i to [0, n) for half-sample symmetric extension."""
    if n == 1:
        return 0
    period = 2 * n
    i = i % period
    return i if i < n else period - 1 - i


def _dwt_matrices(n):
    """Dense (olen, n) lo/hi matrices implementing pywt 1-D dwt, mode='symmetric'.

    out[o] = sum_m rev_dec[m] * x_ext[2*o + 1 + m], pad = F-1 on both sides;
    the symmetric-extension index map is folded into the matrix.
    """
    olen = (n + F_LEN - 1) // 2
    pad = F_LEN - 1
    rev_lo = DB4_DEC_LO[::-1]
    rev_hi = DB4_DEC_HI[::-1]
    a_lo = np.zeros((olen, n), dtype=np.float64)
    a_hi = np.zeros((olen, n), dtype=np.float64)
    for o in range(olen):
        for m in range(F_LEN):
            src = _sym_index(2 * o + 1 + m - pad, n)
            a_lo[o, src] += rev_lo[m]
            a_hi[o, src] += rev_hi[m]
    return a_lo, a_hi


# ----------------------------------------------------------------------------
# Pallas kernel: per (n, channel-block) tile, fused 2-D separable DWT
# ----------------------------------------------------------------------------
def _dwt2_kernel(x_ref, ah_ref, awt_ref, o_ref):
    cb, hp, w = x_ref.shape              # (Cb, H_p, W),  H_p % 8 == 0
    ow2p = awt_ref.shape[1]              # 2oW_p, multiple of 128

    ah = ah_ref[...]                     # (2oH_p, H_p)  f32
    awt = awt_ref[...]                   # (W, 2oW_p)    f32
    x = x_ref[...]
    if x.dtype != jnp.float32:
        x = x.astype(jnp.float32)

    # W pass: channels batched into the matmul M dimension.  The reshape is
    # layout-free because H_p is a multiple of 8 (sublane-aligned merge).
    xw = jnp.dot(x.reshape(cb * hp, w), awt,
                 preferred_element_type=jnp.float32).reshape(cb, hp, ow2p)

    # H pass: per-channel (2oH_p, H_p) @ (H_p, 2oW_p); every operand/result is
    # (8,128)-tile aligned so each write is one full, unmasked slab store.
    for c in range(cb):
        o_ref[c] = jnp.dot(ah, xw[c],
                           preferred_element_type=jnp.float32).astype(o_ref.dtype)


def _choose_channel_block(N, C, H_p, W, oh2_p, ow2_p, out_elem_bytes,
                          budget_bytes=28 << 20):
    """Largest divisor of C whose real per-step VMEM footprint fits the budget.

    Footprint includes: double-buffered x block, double-buffered out block,
    the f32 xw intermediate, and the (double-buffered) AH/AWt matrices.
    """
    fixed = 2 * 4 * (oh2_p * H_p + W * ow2_p)          # ah + awt, dbl-buffered

    def step_bytes(cb):
        x_blk = 2 * cb * H_p * W * 4
        o_blk = 2 * cb * oh2_p * ow2_p * out_elem_bytes
        xw = cb * H_p * ow2_p * 4
        return x_blk + o_blk + xw

    divs = [d for d in range(1, C + 1) if C % d == 0]
    feasible = [d for d in divs if fixed + step_bytes(d) <= budget_bytes] or [1]
    cb = max(feasible)

    # Prefer >= 4 grid steps (pipeline / 2-TC overlap) when per-step work is
    # tiny; otherwise keep the big block (MXU fill + fewer step overheads).
    while cb > 1 and N * (C // cb) < 4 and cb * H_p * W <= 256 * 256:
        smaller = [d for d in feasible if d < cb]
        if not smaller:
            break
        cb = max(smaller)
    return cb


def my_wavelet_module_forward(x):
    """JAX/Pallas equivalent of MyWaveletModule.forward (single-level db4 dwt2)."""
    N, C, H, W = x.shape
    oh = (H + F_LEN - 1) // 2
    ow = (W + F_LEN - 1) // 2

    # Padded, tile-aligned geometry.
    H_p = _round_up(H, 8)
    oh2_p = _round_up(2 * oh, 8)
    ow2_p = _round_up(2 * ow, 128)

    ah_lo, ah_hi = _dwt_matrices(H)
    aw_lo, aw_hi = _dwt_matrices(W)
    # Fused + zero-padded matrices (padding rows/cols are exactly zero).
    ah_np = np.zeros((oh2_p, H_p), dtype=np.float32)
    ah_np[:oh, :H] = ah_lo
    ah_np[oh:2 * oh, :H] = ah_hi
    awt_np = np.zeros((W, ow2_p), dtype=np.float32)
    awt_np[:, :ow] = aw_lo.T
    awt_np[:, ow:2 * ow] = aw_hi.T
    ah = jnp.asarray(ah_np)
    awt = jnp.asarray(awt_np)

    # Zero-pad H so the in-kernel (Cb,H,W)->(Cb*H,W) reshape is layout-free.
    x_in = x if H_p == H else jnp.pad(x, ((0, 0), (0, 0), (0, H_p - H), (0, 0)))

    cb = _choose_channel_block(N, C, H_p, W, oh2_p, ow2_p, x.dtype.itemsize)
    grid = (N, C // cb)

    flops = 2 * N * C * H_p * W * ow2_p + 2 * N * C * oh2_p * H_p * ow2_p
    bytes_accessed = (x_in.size * x.dtype.itemsize
                      + N * C * oh2_p * ow2_p * x.dtype.itemsize
                      + (ah.size + awt.size) * 4)

    quad = pl.pallas_call(
        _dwt2_kernel,
        out_shape=jax.ShapeDtypeStruct((N, C, oh2_p, ow2_p), x.dtype),
        grid_spec=pltpu.PrefetchScalarGridSpec(
            num_scalar_prefetch=0,
            grid=grid,
            in_specs=[
                pl.BlockSpec((pl.Squeezed(), cb, H_p, W), lambda n, c: (n, c, 0, 0)),
                pl.BlockSpec((oh2_p, H_p), lambda n, c: (0, 0)),
                pl.BlockSpec((W, ow2_p), lambda n, c: (0, 0)),
            ],
            out_specs=pl.BlockSpec((pl.Squeezed(), cb, oh2_p, ow2_p),
                                   lambda n, c: (n, c, 0, 0)),
        ),
        compiler_params=pltpu.CompilerParams(
            dimension_semantics=("parallel", "parallel"),
            vmem_limit_bytes=48 * 1024 * 1024),
        cost_estimate=pl.CostEstimate(flops=int(flops), transcendentals=0,
                                      bytes_accessed=int(bytes_accessed)),
    )(x_in, ah, awt)

    # Quadrants of the fused (padded) slab:
    #   [:oh, :ow] = lo-H/lo-W = cA    [:oh, ow:2ow] = lo-H/hi-W = cV
    #   [oh:2oh, :ow] = hi-H/lo-W = cH [oh:2oh, ow:2ow] = hi-H/hi-W = cD
    cA = quad[:, :, :oh, :ow]
    cH = quad[:, :, oh:2 * oh, :ow]
    cV = quad[:, :, :oh, ow:2 * ow]
    cD = quad[:, :, oh:2 * oh, ow:2 * ow]
    # Matches torch.cat([cA, cH, cV, cD], dim=1).
    return jnp.concatenate([cA, cH, cV, cD], axis=1)


# ----------------------------------------------------------------------------
# Pure-numpy reference (independent of the matrix folding) for validation
# ----------------------------------------------------------------------------
def _reference_dwt2_cat(x_np):
    N, C, H, W = x_np.shape
    p = F_LEN - 1
    xp = np.pad(x_np.astype(np.float64), ((0, 0), (0, 0), (p, p), (p, p)),
                mode='symmetric')
    rev_lo = DB4_DEC_LO[::-1]
    rev_hi = DB4_DEC_HI[::-1]
    oh = (H + F_LEN - 1) // 2
    ow = (W + F_LEN - 1) // 2

    def filt(a, rev_f, olen, axis):
        outs = []
        for o in range(olen):
            acc = 0.0
            for m in range(F_LEN):
                acc = acc + rev_f[m] * np.take(a, 2 * o + 1 + m, axis=axis)
            outs.append(acc)
        return np.stack(outs, axis=axis)

    lo_h = filt(xp, rev_lo, oh, 2)
    hi_h = filt(xp, rev_hi, oh, 2)
    cA = filt(lo_h, rev_lo, ow, 3)
    cV = filt(lo_h, rev_hi, ow, 3)
    cH = filt(hi_h, rev_lo, ow, 3)
    cD = filt(hi_h, rev_hi, ow, 3)
    return np.concatenate([cA, cH, cV, cD], axis=1).astype(np.float32)


if __name__ == "__main__":
    key = jax.random.PRNGKey(0)
    x = jax.random.normal(key, (2, 4, 16, 16), dtype=jnp.float32)

    forward = jax.jit(my_wavelet_module_forward)
    out = jax.block_until_ready(forward(x))
    assert out.shape == (2, 16, 11, 11), out.shape

    ref = _reference_dwt2_cat(np.asarray(x))
    np.testing.assert_allclose(np.asarray(out), ref, rtol=2e-2, atol=2e-2)

    print("KERNEL_OK")
</pallas_src>

<mosaic_0001>
module attributes {stable_mosaic.version = 11 : i64} {
  func.func @_dwt2_kernel(%arg0: i32, %arg1: i32, %arg2: memref<1x2x16x16xf32, #tpu.memory_space<vmem>>, %arg3: memref<24x16xf32, #tpu.memory_space<vmem>>, %arg4: memref<16x128xf32, #tpu.memory_space<vmem>>, %arg5: memref<1x2x24x128xf32, #tpu.memory_space<vmem>>) attributes {dimension_semantics = [#tpu.dimension_semantics<parallel>, #tpu.dimension_semantics<parallel>], iteration_bounds = array<i64: 2, 2>, scalar_prefetch = 0 : i64, scratch_operands = 0 : i64, tpu.core_type = #tpu.core_type<tc>, window_params = [{transform_indices = @transform_0, window_bounds = array<i64: 1, 2, 16, 16>}, {pipeline_mode = #tpu.pipeline_mode<synchronous>, transform_indices = @transform_1, window_bounds = array<i64: 24, 16>}, {pipeline_mode = #tpu.pipeline_mode<synchronous>, transform_indices = @transform_2, window_bounds = array<i64: 16, 128>}, {transform_indices = @transform_3, window_bounds = array<i64: 1, 2, 24, 128>}]} {
    %c0 = arith.constant 0 : index
    %c0_0 = arith.constant 0 : index
    %0 = vector.load %arg3[%c0, %c0_0] : memref<24x16xf32, #tpu.memory_space<vmem>>, vector<24x16xf32>
    %c0_1 = arith.constant 0 : index
    %c0_2 = arith.constant 0 : index
    %1 = vector.load %arg4[%c0_1, %c0_2] : memref<16x128xf32, #tpu.memory_space<vmem>>, vector<16x128xf32>
    %c0_3 = arith.constant 0 : index
    %c0_4 = arith.constant 0 : index
    %c0_5 = arith.constant 0 : index
    %c0_6 = arith.constant 0 : index
    %2 = vector.load %arg2[%c0_3, %c0_4, %c0_5, %c0_6] : memref<1x2x16x16xf32, #tpu.memory_space<vmem>>, vector<1x2x16x16xf32>
    %3 = vector.shape_cast %2 : vector<1x2x16x16xf32> to vector<2x16x16xf32>
    %4 = vector.shape_cast %3 : vector<2x16x16xf32> to vector<32x16xf32>
    %cst = arith.constant dense<0.000000e+00> : vector<32x128xf32>
    %5 = tpu.matmul %4, %1, %cst {dimension_numbers = #tpu.dot_dimension_numbers<[1], [0], [0], [1], [0, 0, 1, 1], [], []>} : vector<32x16xf32>, vector<16x128xf32>, vector<32x128xf32> -> vector<32x128xf32>
    %6 = vector.shape_cast %5 : vector<32x128xf32> to vector<2x16x128xf32>
    %7 = vector.extract_strided_slice %6 {offsets = [0, 0, 0], sizes = [1, 16, 128], strides = [1, 1, 1]} : vector<2x16x128xf32> to vector<1x16x128xf32>
    %8 = vector.shape_cast %7 : vector<1x16x128xf32> to vector<16x128xf32>
    %cst_7 = arith.constant dense<0.000000e+00> : vector<24x128xf32>
    %9 = tpu.matmul %0, %8, %cst_7 {dimension_numbers = #tpu.dot_dimension_numbers<[1], [0], [0], [1], [0, 0, 1, 1], [], []>} : vector<24x16xf32>, vector<16x128xf32>, vector<24x128xf32> -> vector<24x128xf32>
    %c0_8 = arith.constant 0 : index
    %c0_9 = arith.constant 0 : index
    %c0_10 = arith.constant 0 : index
    %c0_11 = arith.constant 0 : index
    %10 = vector.load %arg5[%c0_8, %c0_9, %c0_10, %c0_11] : memref<1x2x24x128xf32, #tpu.memory_space<vmem>>, vector<1x1x24x128xf32>
    %11 = vector.shape_cast %10 : vector<1x1x24x128xf32> to vector<24x128xf32>
    %12 = vector.shape_cast %9 : vector<24x128xf32> to vector<1x1x24x128xf32>
    tpu.vector_store %arg5[%c0_8, %c0_9, %c0_10, %c0_11], %12 {strides = array<i32>} : memref<1x2x24x128xf32, #tpu.memory_space<vmem>>, vector<1x1x24x128xf32>,
    %13 = vector.extract_strided_slice %6 {offsets = [1, 0, 0], sizes = [1, 16, 128], strides = [1, 1, 1]} : vector<2x16x128xf32> to vector<1x16x128xf32>
    %14 = vector.shape_cast %13 : vector<1x16x128xf32> to vector<16x128xf32>
    %cst_12 = arith.constant dense<0.000000e+00> : vector<24x128xf32>
    %15 = tpu.matmul %0, %14, %cst_12 {dimension_numbers = #tpu.dot_dimension_numbers<[1], [0], [0], [1], [0, 0, 1, 1], [], []>} : vector<24x16xf32>, vector<16x128xf32>, vector<24x128xf32> -> vector<24x128xf32>
    %c0_13 = arith.constant 0 : index
    %c1 = arith.constant 1 : index
    %c0_14 = arith.constant 0 : index
    %c0_15 = arith.constant 0 : index
    %16 = vector.load %arg5[%c0_13, %c1, %c0_14, %c0_15] : memref<1x2x24x128xf32, #tpu.memory_space<vmem>>, vector<1x1x24x128xf32>
    %17 = vector.shape_cast %16 : vector<1x1x24x128xf32> to vector<24x128xf32>
    %18 = vector.shape_cast %15 : vector<24x128xf32> to vector<1x1x24x128xf32>
    tpu.vector_store %arg5[%c0_13, %c1, %c0_14, %c0_15], %18 {strides = array<i32>} : memref<1x2x24x128xf32, #tpu.memory_space<vmem>>, vector<1x1x24x128xf32>,
    return
  }
  func.func @transform_0(%arg0: i32, %arg1: i32) -> (i32, i32, i32, i32) {
    %c0_i32 = arith.constant 0 : i32
    %c0_i32_0 = arith.constant 0 : i32
    %c0_i32_1 = arith.constant 0 : i32
    return %arg0, %arg1, %c0_i32, %c0_i32_0 : i32, i32, i32, i32
  }
  func.func @transform_1(%arg0: i32, %arg1: i32) -> (i32, i32) {
    %c0_i32 = arith.constant 0 : i32
    %c0_i32_0 = arith.constant 0 : i32
    %c0_i32_1 = arith.constant 0 : i32
    return %c0_i32, %c0_i32_0 : i32, i32
  }
  func.func @transform_2(%arg0: i32, %arg1: i32) -> (i32, i32) {
    %c0_i32 = arith.constant 0 : i32
    %c0_i32_0 = arith.constant 0 : i32
    %c0_i32_1 = arith.constant 0 : i32
    return %c0_i32, %c0_i32_0 : i32, i32
  }
  func.func @transform_3(%arg0: i32, %arg1: i32) -> (i32, i32, i32, i32) {
    %c0_i32 = arith.constant 0 : i32
    %c0_i32_0 = arith.constant 0 : i32
    %c0_i32_1 = arith.constant 0 : i32
    return %arg0, %arg1, %c0_i32, %c0_i32_0 : i32, i32, i32, i32
  }
}

</mosaic_0001>

<llo_original>
// kernel: my_wavelet_module_forward.1
$region0: #{my_wavelet_module_forward.1}
  #allocation0 [shape = 'u32[]', space=smem, size = 0x4, offset = 0x4, fixed_abs, tag = 'smem constant byte address 0x4 - core index']
  #allocation1 [shape = 'u32[144,128]{1,0:T(1,128)}', space=vmem, size = 0x12000, scoped, tag = 'internal scratch']
  %s0 = inlined_call_operand.hbm [shape: f32[2,4,16,16], index: 0, kind: input, shape index: {}]
  %s1 = inlined_call_operand.hbm [shape: f32[24,16], index: 1, kind: input, shape index: {}]
  %s2 = inlined_call_operand.hbm [shape: f32[16,128], index: 2, kind: input, shape index: {}]
  %s3 = inlined_call_operand.vmem [shape: f32[2,4,24,128], index: 3, kind: output, shape index: {}]
  %s4 = sld [smem:[#allocation0]]
  $region57: #{my_wavelet_module_forward.1} parent=0
    _
  %s6 = ssub.s32 1, %s4
  %s7 = scalar_select 0, %s6, %s4
  $region1: #{my_wavelet_module_forward.1} parent=0
    #allocation2 [shape = 'u8[32768]{0}', space=vmem, size = 0x8000, scoped, tag = 'input window, operand 0']
    #allocation3 [shape = 's32[2]{0}', space=sflag, size = 0x8, scoped, tag = 'scoped memory for my_wavelet_module_forward.1']
    #allocation4 [shape = 'u8[12288]{0}', space=vmem, size = 0x3000, scoped, tag = 'input window, operand 1, single buffered']
    #allocation5 [shape = 's32[1]{0}', space=sflag, size = 0x4, scoped, tag = 'scoped memory for my_wavelet_module_forward.1']
    #allocation6 [shape = 'u8[8192]{0}', space=vmem, size = 0x2000, scoped, tag = 'input window, operand 2, single buffered']
    %8 = vsyncpa [#allocation3], 0
    %s9 = scalar_lea.sflag [#allocation3], 1
    %10 = vsyncpa %s9, 0
    %11 = vsyncpa [#allocation5], 0
    loop: start=0, step=1, limit=6
    $region2: #{my_wavelet_module_forward.1} parent=1 // loop_pre_header
      _
    $region3: #{my_wavelet_module_forward.1} parent=1 // loop_header
      %s13 = sphi 0, %s17
      %p14 = scmp.ge.s32.totalorder %s13, 6
      %s20 = sphi 0, %s32
      %s21 = sphi 0, %s28
      %s22 = sphi 0, %s20
      %s23 = sphi 0, %s21
      %s24 = sphi 0, %s22
      %s25 = sphi 0, %s23
      %s37 = sphi 0, %s39
      %s40 = sphi 0, %s37
      %s41 = sphi 0, %s40
      %s57 = sphi 0, %s41
      %s61 = sphi 0, %s61
      %s63 = sphi 0, %s61
      %s64 = sphi 0, %s63
      %s78 = sphi 0, %s64
      %s82 = sphi 0, %s82
      %s84 = sphi 0, %s82
      %s85 = sphi 0, %s84
      %s99 = sphi 0, %s85
      %s107 = sphi 0, %s109
      %s110 = sphi 0, %s107
      %s111 = sphi 0, %s110
      %s127 = sphi 0, %s111
    $region4: #{my_wavelet_module_forward.1} parent=1 // loop_header_branch
      %16 = sbr.rel (%p14) target = $region8
    $region5: #{my_wavelet_module_forward.1} parent=1 // loop_body
      %s18 = ssub.s32 %s13, 1
      %s19 = ssub.s32 %s13, 2
      %s26 = sadd.s32 1, %s21
      %p27 = scmp.ge.s32.totalorder %s26, 2
      %s28 = scalar_select %p27, 0, %s26
      %s29 = sadd.s32 1, %s20
      %s30 = scalar_select %p27, %s29, %s20
      %p31 = scmp.ge.s32.totalorder %s30, 2
      %s32 = scalar_select %p31, 0, %s30
      %s33 = ssub.s32 %s20, %s32
      %s34 = ssub.s32 %s21, %s28
      %s35 = sor.u32 %s33, %s34
      %p36 = scmp.eq.s32.totalorder %s35, 0
      %s38 = sadd.s32 %s37, 1
      %s39 = scalar_select %p36, %s37, %s38
      %p42 = pneg %p36
      %p43 = scmp.eq.s32.totalorder %s13, 3
      %p44 = por %p42, %p43
      %p45 = scmp.ne.s32.totalorder %s37, %s40
      %p46 = scmp.eq.s32.totalorder %s13, 0
      %p47 = por %p45, %p46
      %p48 = scmp.ne.s32.totalorder %s37, %s40
      %p49 = scmp.eq.s32.totalorder %s18, 3
      %p50 = por %p48, %p49
      %p51 = scmp.ne.s32.totalorder %s40, %s41
      %p52 = scmp.eq.s32.totalorder %s18, 0
      %p53 = por %p51, %p52
      %p54 = scmp.ne.s32.totalorder %s40, %s41
      %p55 = scmp.eq.s32.totalorder %s19, 3
      %p56 = por %p54, %p55
      %p58 = scmp.ne.s32.totalorder %s41, %s57
      %p59 = scmp.eq.s32.totalorder %s19, 0
      %p60 = por %p58, %p59
      %s62 = sadd.s32 %s61, 1
      %p65 = scmp.eq.s32.totalorder %s13, 3
      %p66 = scmp.ne.s32.totalorder %s61, %s63
      %p67 = scmp.eq.s32.totalorder %s13, 0
      %p68 = por %p66, %p67
      %p69 = scmp.ne.s32.totalorder %s61, %s63
      %p70 = scmp.eq.s32.totalorder %s18, 3
      %p71 = por %p69, %p70
      %p72 = scmp.ne.s32.totalorder %s63, %s64
      %p73 = scmp.eq.s32.totalorder %s18, 0
      %p74 = por %p72, %p73
      %p75 = scmp.ne.s32.totalorder %s63, %s64
      %p76 = scmp.eq.s32.totalorder %s19, 3
      %p77 = por %p75, %p76
      %p79 = scmp.ne.s32.totalorder %s64, %s78
      %p80 = scmp.eq.s32.totalorder %s19, 0
      %p81 = por %p79, %p80
      %s83 = sadd.s32 %s82, 1
      %p86 = scmp.eq.s32.totalorder %s13, 3
      %p87 = scmp.ne.s32.totalorder %s82, %s84
      %p88 = scmp.eq.s32.totalorder %s13, 0
      %p89 = por %p87, %p88
      %p90 = scmp.ne.s32.totalorder %s82, %s84
      %p91 = scmp.eq.s32.totalorder %s18, 3
      %p92 = por %p90, %p91
      %p93 = scmp.ne.s32.totalorder %s84, %s85
      %p94 = scmp.eq.s32.totalorder %s18, 0
      %p95 = por %p93, %p94
      %p96 = scmp.ne.s32.totalorder %s84, %s85
      %p97 = scmp.eq.s32.totalorder %s19, 3
      %p98 = por %p96, %p97
      %p100 = scmp.ne.s32.totalorder %s85, %s99
      %p101 = scmp.eq.s32.totalorder %s19, 0
      %p102 = por %p100, %p101
      %s103 = ssub.s32 %s20, %s32
      %s104 = ssub.s32 %s21, %s28
      %s105 = sor.u32 %s103, %s104
      %p106 = scmp.eq.s32.totalorder %s105, 0
      %s108 = sadd.s32 %s107, 1
      %s109 = scalar_select %p106, %s107, %s108
      %p112 = pneg %p106
      %p113 = scmp.eq.s32.totalorder %s13, 3
      %p114 = por %p112, %p113
      %p115 = scmp.ne.s32.totalorder %s107, %s110
      %p116 = scmp.eq.s32.totalorder %s13, 0
      %p117 = por %p115, %p116
      %p118 = scmp.ne.s32.totalorder %s107, %s110
      %p119 = scmp.eq.s32.totalorder %s18, 3
      %p120 = por %p118, %p119
      %p121 = scmp.ne.s32.totalorder %s110, %s111
      %p122 = scmp.eq.s32.totalorder %s18, 0
      %p123 = por %p121, %p122
      %p124 = scmp.ne.s32.totalorder %s110, %s111
      %p125 = scmp.eq.s32.totalorder %s19, 3
      %p126 = por %p124, %p125
      %p128 = scmp.ne.s32.totalorder %s111, %s127
      %p129 = scmp.eq.s32.totalorder %s19, 0
      %p130 = por %p128, %p129
      %p131 = scmp.le.s32.totalorder 1, %s13
      %p132 = scmp.lt.s32.totalorder %s13, 5
      %p133 = pnand %p131, %p132
      %p134 = pneg %p133
      // Predicated region
      $region9: #{my_wavelet_module_forward.1} parent=5 // pred_check
        _
      $region10: #{my_wavelet_module_forward.1} parent=5 // pred_check_branch
        %136 = sbr.rel (%p133) target = $region12
      $region11: #{my_wavelet_module_forward.1} parent=5 // pred_region
        %s137 = ssub.s32 %s13, 1
        // Predicated region
        $region13: #{my_wavelet_module_forward.1} parent=11 // pred_check
          %p138 = pneg %p74
        $region14: #{my_wavelet_module_forward.1} parent=11 // pred_check_branch
          %140 = sbr.rel (%p138) target = $region16
        $region15: #{my_wavelet_module_forward.1} parent=11 // pred_region
          %s142 = ssub.s32 384, 384
          %143 = vsyncadd [#allocation5], %s142
          %s144 = sshll.u32 [#allocation4], 4
          %s145 = int_to_ptr.vmem [resolvable:$true] %s144
          %150 = dma.hbm_to_vmem [thread:$0]  %s1, 384, %s145, [#allocation5], 128, 128, 8
        $region16: #{my_wavelet_module_forward.1} parent=11 // pred_fallthru
          _
        // Predicated region
        $region17: #{my_wavelet_module_forward.1} parent=11 // pred_check
          %p151 = pneg %p95
        $region18: #{my_wavelet_module_forward.1} parent=11 // pred_check_branch
          %153 = sbr.rel (%p151) target = $region20
        $region19: #{my_wavelet_module_forward.1} parent=11 // pred_region
          %s155 = ssub.s32 256, 256
          %156 = vsyncadd [#allocation5], %s155
          %s157 = sshll.u32 [#allocation6], 4
          %s158 = int_to_ptr.vmem [resolvable:$true] %s157
          %163 = dma.hbm_to_vmem [thread:$0]  %s2, 256, %s158, [#allocation5], 128, 128, 8
        $region20: #{my_wavelet_module_forward.1} parent=11 // pred_fallthru
          _
      $region12: #{my_wavelet_module_forward.1} parent=5 // pred_fallthru
        _
      %p164 = scmp.lt.s32.totalorder %s13, 4
      // Predicated region
      $region21: #{my_wavelet_module_forward.1} parent=5 // pred_check
        %p165 = pneg %p164
      $region22: #{my_wavelet_module_forward.1} parent=5 // pred_check_branch
        %167 = sbr.rel (%p165) target = $region24
      $region23: #{my_wavelet_module_forward.1} parent=5 // pred_region
        // Predicated region
        $region25: #{my_wavelet_module_forward.1} parent=23 // pred_check
          %p168 = pneg %p47
        $region26: #{my_wavelet_module_forward.1} parent=23 // pred_check_branch
          %170 = sbr.rel (%p168) target = $region28
        $region27: #{my_wavelet_module_forward.1} parent=23 // pred_region
          %s171 = sand.u32 %s37, 1
          %s172 = scalar_lea.sflag [#allocation3], %s171
          %s173 = sand.u32 %s37, 1
          %s174 = smul.addr %s173, 32
          %s175 = scalar_lea.vmem [#allocation2], %s174
          %s176 = smul.u32 2, %s21
          %s178 = ssub.s32 512, 512
          %179 = vsyncadd %s172, %s178
          %s180 = smul.addr %s176, 2
          %s181 = smul.addr %s20, 8
          %s182 = sadd.s32 %s180, %s181
          %s183 = smul.addr %s182, 128
          %s184 = scalar_lea.hbm %s0, %s183
          %s185 = sshll.u32 %s175, 4
          %s186 = int_to_ptr.vmem [resolvable:$true] %s185
          %191 = dma.hbm_to_vmem [thread:$0]  %s184, 512, %s186, %s172, 128, 128, 8
        $region28: #{my_wavelet_module_forward.1} parent=23 // pred_fallthru
          _
      $region24: #{my_wavelet_module_forward.1} parent=5 // pred_fallthru
        _
      %p192 = scmp.le.s32.totalorder 1, %s13
      %p193 = scmp.lt.s32.totalorder %s13, 5
      %p194 = pnand %p192, %p193
      %p195 = pneg %p194
      // Predicated region
      $region29: #{my_wavelet_module_forward.1} parent=5 // pred_check
        _
      $region30: #{my_wavelet_module_forward.1} parent=5 // pred_check_branch
        %197 = sbr.rel (%p194) target = $region32
      $region31: #{my_wavelet_module_forward.1} parent=5 // pred_region
        %s198 = ssub.s32 %s13, 1
        %s199 = sand.u32 %s40, 1
        %s200 = scalar_lea.sflag [#allocation3], %s199
        %s201 = sand.u32 %s40, 1
        %s202 = smul.addr %s201, 32
        %s203 = scalar_lea.vmem [#allocation2], %s202
        // Predicated region
        $region33: #{my_wavelet_module_forward.1} parent=31 // pred_check
          %p204 = pneg %p53
        $region34: #{my_wavelet_module_forward.1} parent=31 // pred_check_branch
          %206 = sbr.rel (%p204) target = $region36
        $region35: #{my_wavelet_module_forward.1} parent=31 // pred_region
          %207 = dma.done %s200, 512
        $region36: #{my_wavelet_module_forward.1} parent=31 // pred_fallthru
          _
        // Predicated region
        $region37: #{my_wavelet_module_forward.1} parent=31 // pred_check
          %p208 = pneg %p74
        $region38: #{my_wavelet_module_forward.1} parent=31 // pred_check_branch
          %210 = sbr.rel (%p208) target = $region40
        $region39: #{my_wavelet_module_forward.1} parent=31 // pred_region
          %211 = dma.done [#allocation5], 384
        $region40: #{my_wavelet_module_forward.1} parent=31 // pred_fallthru
          _
        // Predicated region
        $region41: #{my_wavelet_module_forward.1} parent=31 // pred_check
          %p212 = pneg %p95
        $region42: #{my_wavelet_module_forward.1} parent=31 // pred_check_branch
          %214 = sbr.rel (%p212) target = $region44
        $region43: #{my_wavelet_module_forward.1} parent=31 // pred_region
          %215 = dma.done [#allocation5], 256
        $region44: #{my_wavelet_module_forward.1} parent=31 // pred_fallthru
          _
        %s216 = sand.u32 %s40, 1
        %s217 = scalar_lea.sflag [#allocation3], %s216
        %s218 = sand.u32 %s40, 1
        %s219 = smul.addr %s218, 32
        %s220 = scalar_lea.vmem [#allocation2], %s219
        %p221 = pneg %p53
        %p222 = pneg %p50
        %p223 = pneg %p74
        %p224 = pneg %p71
        %p225 = pneg %p95
        %p226 = pneg %p92
        %p227 = pneg %p123
        %p228 = pneg %p120
        %s229 = smul.u32 2, %s23
        %p230 = scmp.lt.s32.totalorder %s22, 1
        %s231 = scalar_select %p230, %s22, 1
        %p232 = scmp.lt.s32.totalorder %s229, 3
        %s233 = scalar_select %p232, %s229, 3
        %s234 = smul.addr %s233, 3
        %s235 = smul.addr %s231, 12
        %s236 = sadd.s32 %s234, %s235
        %s237 = smul.addr %s236, 8
        %s238 = scalar_lea.vmem %s3, %s237
        %s239 = smul.u32 2, %s23
        %s240 = smul.u32 2, %s23
        %p241 = scmp.lt.s32.totalorder %s22, 1
        %s242 = scalar_select %p241, %s22, 1
        %p243 = scmp.lt.s32.totalorder %s240, 3
        %s244 = scalar_select %p243, %s240, 3
        %s245 = smul.addr %s244, 3
        %s246 = smul.addr %s242, 12
        %s247 = sadd.s32 %s245, %s246
        %s248 = smul.addr %s247, 8
        %s249 = scalar_lea.vmem %s3, %s248
        %s250 = smul.u32 2, %s23
        %v251 = vld [vmem:[#allocation4] sm:$0xff]
        %v252 = vld [vmem:[#allocation4 + $0x8] sm:$0xff]
        %v253 = vld [vmem:[#allocation4 + $0x10] sm:$0xff]
        %v254 = vld [vmem:[#allocation6] sm:$0xff]
        %v255 = vld [vmem:[#allocation6 + $0x8] sm:$0xff]
        %v256 = vld [vmem:[%s203] sm:$0xff]
        %v257 = vld [vmem:[%s203 + $0x8] sm:$0xff]
        %v258 = vld [vmem:[%s203 + $0x10] sm:$0xff]
        %v259 = vld [vmem:[%s203 + $0x18] sm:$0xff]
        %vm260 = vcmask 130048
        %v262 = vsel %vm260, %v256, 0
        %v265 = vsel %vm260, %v257, 0
        %v268 = vsel %vm260, %v258, 0
        %v271 = vsel %vm260, %v259, 0
        %273 = vmatprep.subr.mxu0 0.0
        %274 = vmatpush1.msra.mxu0 0.0
        %275 = vmatprep.subr.mxu0 0.0
        %276 = vmatpush1.msra.mxu0 0.0
        %277 = vmatprep.subr.mxu0 0.0
        %278 = vmatpush1.msra.mxu0 0.0
        %279 = vmatprep.subr.mxu0 0.0
        %280 = vmatpush1.msra.mxu0 0.0
        %281 = vmatprep.subr.mxu0 0.0
        %282 = vmatpush1.msra.mxu0 0.0
        %283 = vmatprep.subr.mxu0 0.0
        %284 = vmatpush1.msra.mxu0 0.0
        %285 = vmatprep.subr.mxu0 0.0
        %286 = vmatpush1.msra.mxu0 0.0
        %287 = vmatprep.subr.mxu0 0.0
        %288 = vmatpush1.msra.mxu0 0.0
        %289 = vmatprep.subr.mxu0 0.0
        %290 = vmatpush1.msra.mxu0 0.0
        %291 = vmatprep.subr.mxu0 0.0
        %292 = vmatpush1.msra.mxu0 0.0
        %293 = vmatprep.subr.mxu0 0.0
        %294 = vmatpush1.msra.mxu0 0.0
        %295 = vmatprep.subr.mxu0 0.0
        %296 = vmatpush1.msra.mxu0 0.0
        %297 = vmatprep.subr.mxu0 0.0
        %298 = vmatpush1.msra.mxu0 0.0
        %299 = vmatprep.subr.mxu0 0.0
        %300 = vmatpush1.msra.mxu0 0.0
        %301 = vmatprep.subr.mxu0 0.0
        %302 = vmatpush1.msra.mxu0 %v255
        %303 = vmatprep.subr.mxu0 0.0
        %304 = vmatpush1.msra.mxu0 %v254
        %305 = vmatprep.subr.mxu0 0.0
        %306 = vmatpush2.msra.mxu0 0.0
        %307 = vmatprep.subr.mxu0 0.0
        %308 = vmatpush2.msra.mxu0 0.0
        %309 = vmatprep.subr.mxu0 0.0
        %310 = vmatpush2.msra.mxu0 0.0
        %311 = vmatprep.subr.mxu0 0.0
        %312 = vmatpush2.msra.mxu0 0.0
        %313 = vmatprep.subr.mxu0 0.0
        %314 = vmatpush2.msra.mxu0 0.0
        %315 = vmatprep.subr.mxu0 0.0
        %316 = vmatpush2.msra.mxu0 0.0
        %317 = vmatprep.subr.mxu0 0.0
        %318 = vmatpush2.msra.mxu0 0.0
        %319 = vmatprep.subr.mxu0 0.0
        %320 = vmatpush2.msra.mxu0 0.0
        %321 = vmatprep.subr.mxu0 0.0
        %322 = vmatpush2.msra.mxu0 0.0
        %323 = vmatprep.subr.mxu0 0.0
        %324 = vmatpush2.msra.mxu0 0.0
        %325 = vmatprep.subr.mxu0 0.0
        %326 = vmatpush2.msra.mxu0 0.0
        %327 = vmatprep.subr.mxu0 0.0
        %328 = vmatpush2.msra.mxu0 0.0
        %329 = vmatprep.subr.mxu0 0.0
        %330 = vmatpush2.msra.mxu0 0.0
        %331 = vmatprep.subr.mxu0 0.0
        %332 = vmatpush2.msra.mxu0 0.0
        %333 = vmatprep.subr.mxu0 0.0
        %334 = vmatpush2.msra.mxu0 0.0
        %335 = vmatprep.subr.mxu0 0.0
        %336 = vmatpush2.msra.mxu0 0.0
        %337 = vmatprep.mubr.f32.mxu0 0.0
        %338 = vmatmul.mubr.f32.gmra.mxu0 %v262
        %v339 = vpop.f32.mrf.mxu0
        %v340 = vadd.f32 0.0, %v339
        %v341 = vpop.f32.mrf.mxu0
        %342 = vmatprep.mubr.f32.mxu0 0.0
        %343 = vmatmul.mubr.f32.gmra.mxu0 %v265
        %v344 = vpop.f32.mrf.mxu0
        %v345 = vadd.f32 0.0, %v344
        %v346 = vpop.f32.mrf.mxu0
        %347 = vmatprep.mubr.f32.mxu0 0.0
        %348 = vmatmul.mubr.f32.gmra.mxu0 %v268
        %v349 = vpop.f32.mrf.mxu0
        %v350 = vadd.f32 0.0, %v349
        %v351 = vpop.f32.mrf.mxu0
        %352 = vmatprep.mubr.f32.mxu0 0.0
        %353 = vmatmul.mubr.f32.gmra.mxu0 %v271
        %v354 = vpop.f32.mrf.mxu0
        %v355 = vadd.f32 0.0, %v354
        %v356 = vpop.f32.mrf.mxu0
        %357 = vdwg.mxu0
        %v359 = vsel %vm260, %v251, 0
        %v362 = vsel %vm260, %v252, 0
        %v365 = vsel %vm260, %v253, 0
        %367 = vmatprep.subr.mxu0 0.0
        %368 = vmatpush1.msra.mxu0 0.0
        %369 = vmatprep.subr.mxu0 0.0
        %370 = vmatpush1.msra.mxu0 0.0
        %371 = vmatprep.subr.mxu0 0.0
        %372 = vmatpush1.msra.mxu0 0.0
        %373 = vmatprep.subr.mxu0 0.0
        %374 = vmatpush1.msra.mxu0 0.0
        %375 = vmatprep.subr.mxu0 0.0
        %376 = vmatpush1.msra.mxu0 0.0
        %377 = vmatprep.subr.mxu0 0.0
        %378 = vmatpush1.msra.mxu0 0.0
        %379 = vmatprep.subr.mxu0 0.0
        %380 = vmatpush1.msra.mxu0 0.0
        %381 = vmatprep.subr.mxu0 0.0
        %382 = vmatpush1.msra.mxu0 0.0
        %383 = vmatprep.subr.mxu0 0.0
        %384 = vmatpush1.msra.mxu0 0.0
        %385 = vmatprep.subr.mxu0 0.0
        %386 = vmatpush1.msra.mxu0 0.0
        %387 = vmatprep.subr.mxu0 0.0
        %388 = vmatpush1.msra.mxu0 0.0
        %389 = vmatprep.subr.mxu0 0.0
        %390 = vmatpush1.msra.mxu0 0.0
        %391 = vmatprep.subr.mxu0 0.0
        %392 = vmatpush1.msra.mxu0 0.0
        %393 = vmatprep.subr.mxu0 0.0
        %394 = vmatpush1.msra.mxu0 0.0
        %395 = vmatprep.subr.mxu0 0.0
        %396 = vmatpush1.msra.mxu0 %v345
        %397 = vmatprep.subr.mxu0 0.0
        %398 = vmatpush1.msra.mxu0 %v340
        %399 = vmatprep.subr.mxu0 0.0
        %400 = vmatpush2.msra.mxu0 0.0
        %401 = vmatprep.subr.mxu0 0.0
        %402 = vmatpush2.msra.mxu0 0.0
        %403 = vmatprep.subr.mxu0 0.0
        %404 = vmatpush2.msra.mxu0 0.0
        %405 = vmatprep.subr.mxu0 0.0
        %406 = vmatpush2.msra.mxu0 0.0
        %407 = vmatprep.subr.mxu0 0.0
        %408 = vmatpush2.msra.mxu0 0.0
        %409 = vmatprep.subr.mxu0 0.0
        %410 = vmatpush2.msra.mxu0 0.0
        %411 = vmatprep.subr.mxu0 0.0
        %412 = vmatpush2.msra.mxu0 0.0
        %413 = vmatprep.subr.mxu0 0.0
        %414 = vmatpush2.msra.mxu0 0.0
        %415 = vmatprep.subr.mxu0 0.0
        %416 = vmatpush2.msra.mxu0 0.0
        %417 = vmatprep.subr.mxu0 0.0
        %418 = vmatpush2.msra.mxu0 0.0
        %419 = vmatprep.subr.mxu0 0.0
        %420 = vmatpush2.msra.mxu0 0.0
        %421 = vmatprep.subr.mxu0 0.0
        %422 = vmatpush2.msra.mxu0 0.0
        %423 = vmatprep.subr.mxu0 0.0
        %424 = vmatpush2.msra.mxu0 0.0
        %425 = vmatprep.subr.mxu0 0.0
        %426 = vmatpush2.msra.mxu0 0.0
        %427 = vmatprep.subr.mxu0 0.0
        %428 = vmatpush2.msra.mxu0 0.0
        %429 = vmatprep.subr.mxu0 0.0
        %430 = vmatpush2.msra.mxu0 0.0
        %431 = vmatprep.mubr.f32.mxu0 0.0
        %432 = vmatmul.mubr.f32.gmra.mxu0 %v359
        %v433 = vpop.f32.mrf.mxu0
        %v434 = vadd.f32 0.0, %v433
        %v435 = vpop.f32.mrf.mxu0
        %436 = vmatprep.mubr.f32.mxu0 0.0
        %437 = vmatmul.mubr.f32.gmra.mxu0 %v362
        %v438 = vpop.f32.mrf.mxu0
        %v439 = vadd.f32 0.0, %v438
        %v440 = vpop.f32.mrf.mxu0
        %441 = vmatprep.mubr.f32.mxu0 0.0
        %442 = vmatmul.mubr.f32.gmra.mxu0 %v365
        %v443 = vpop.f32.mrf.mxu0
        %v444 = vadd.f32 0.0, %v443
        %v445 = vpop.f32.mrf.mxu0
        %446 = vdwg.mxu0
        %447 = vst [vmem:[%s249] sm:$0xff] %v434
        %448 = vst [vmem:[%s249 + $0x8] sm:$0xff] %v439
        %449 = vst [vmem:[%s249 + $0x10] sm:$0xff] %v444
        %450 = vmatprep.subr.mxu0 0.0
        %451 = vmatpush1.msra.mxu0 0.0
        %452 = vmatprep.subr.mxu0 0.0
        %453 = vmatpush1.msra.mxu0 0.0
        %454 = vmatprep.subr.mxu0 0.0
        %455 = vmatpush1.msra.mxu0 0.0
        %456 = vmatprep.subr.mxu0 0.0
        %457 = vmatpush1.msra.mxu0 0.0
        %458 = vmatprep.subr.mxu0 0.0
        %459 = vmatpush1.msra.mxu0 0.0
        %460 = vmatprep.subr.mxu0 0.0
        %461 = vmatpush1.msra.mxu0 0.0
        %462 = vmatprep.subr.mxu0 0.0
        %463 = vmatpush1.msra.mxu0 0.0
        %464 = vmatprep.subr.mxu0 0.0
        %465 = vmatpush1.msra.mxu0 0.0
        %466 = vmatprep.subr.mxu0 0.0
        %467 = vmatpush1.msra.mxu0 0.0
        %468 = vmatprep.subr.mxu0 0.0
        %469 = vmatpush1.msra.mxu0 0.0
        %470 = vmatprep.subr.mxu0 0.0
        %471 = vmatpush1.msra.mxu0 0.0
        %472 = vmatprep.subr.mxu0 0.0
        %473 = vmatpush1.msra.mxu0 0.0
        %474 = vmatprep.subr.mxu0 0.0
        %475 = vmatpush1.msra.mxu0 0.0
        %476 = vmatprep.subr.mxu0 0.0
        %477 = vmatpush1.msra.mxu0 0.0
        %478 = vmatprep.subr.mxu0 0.0
        %479 = vmatpush1.msra.mxu0 %v355
        %480 = vmatprep.subr.mxu0 0.0
        %481 = vmatpush1.msra.mxu0 %v350
        %482 = vmatprep.subr.mxu0 0.0
        %483 = vmatpush2.msra.mxu0 0.0
        %484 = vmatprep.subr.mxu0 0.0
        %485 = vmatpush2.msra.mxu0 0.0
        %486 = vmatprep.subr.mxu0 0.0
        %487 = vmatpush2.msra.mxu0 0.0
        %488 = vmatprep.subr.mxu0 0.0
        %489 = vmatpush2.msra.mxu0 0.0
        %490 = vmatprep.subr.mxu0 0.0
        %491 = vmatpush2.msra.mxu0 0.0
        %492 = vmatprep.subr.mxu0 0.0
        %493 = vmatpush2.msra.mxu0 0.0
        %494 = vmatprep.subr.mxu0 0.0
        %495 = vmatpush2.msra.mxu0 0.0
        %496 = vmatprep.subr.mxu0 0.0
        %497 = vmatpush2.msra.mxu0 0.0
        %498 = vmatprep.subr.mxu0 0.0
        %499 = vmatpush2.msra.mxu0 0.0
        %500 = vmatprep.subr.mxu0 0.0
        %501 = vmatpush2.msra.mxu0 0.0
        %502 = vmatprep.subr.mxu0 0.0
        %503 = vmatpush2.msra.mxu0 0.0
        %504 = vmatprep.subr.mxu0 0.0
        %505 = vmatpush2.msra.mxu0 0.0
        %506 = vmatprep.subr.mxu0 0.0
        %507 = vmatpush2.msra.mxu0 0.0
        %508 = vmatprep.subr.mxu0 0.0
        %509 = vmatpush2.msra.mxu0 0.0
        %510 = vmatprep.subr.mxu0 0.0
        %511 = vmatpush2.msra.mxu0 0.0
        %512 = vmatprep.subr.mxu0 0.0
        %513 = vmatpush2.msra.mxu0 0.0
        %514 = vmatprep.mubr.f32.mxu0 0.0
        %515 = vmatmul.mubr.f32.gmra.mxu0 %v359
        %v516 = vpop.f32.mrf.mxu0
        %v517 = vadd.f32 0.0, %v516
        %v518 = vpop.f32.mrf.mxu0
        %519 = vmatprep.mubr.f32.mxu0 0.0
        %520 = vmatmul.mubr.f32.gmra.mxu0 %v362
        %v521 = vpop.f32.mrf.mxu0
        %v522 = vadd.f32 0.0, %v521
        %v523 = vpop.f32.mrf.mxu0
        %524 = vmatprep.mubr.f32.mxu0 0.0
        %525 = vmatmul.mubr.f32.gmra.mxu0 %v365
        %v526 = vpop.f32.mrf.mxu0
        %v527 = vadd.f32 0.0, %v526
        %v528 = vpop.f32.mrf.mxu0
        %529 = vdwg.mxu0
        %s530 = scalar_lea.vmem %s249, 24
        %531 = vst [vmem:[%s530] sm:$0xff] %v517
        %532 = vst [vmem:[%s530 + $0x8] sm:$0xff] %v522
        %533 = vst [vmem:[%s530 + $0x10] sm:$0xff] %v527
        %s534 = smul.u32 2, %s23
        %p535 = scmp.lt.s32.totalorder %s22, 1
        %s536 = scalar_select %p535, %s22, 1
        %p537 = scmp.lt.s32.totalorder %s534, 3
        %s538 = scalar_select %p537, %s534, 3
        %s539 = smul.addr %s538, 3
        %s540 = smul.addr %s536, 12
        %s541 = sadd.s32 %s539, %s540
        %s542 = smul.addr %s541, 8
        %s543 = scalar_lea.vmem %s3, %s542
        // Predicated region
        $region45: #{my_wavelet_module_forward.1} parent=31 // pred_check
          %p544 = pneg %p120
        $region46: #{my_wavelet_module_forward.1} parent=31 // pred_check_branch
          %546 = sbr.rel (%p544) target = $region48
        $region47: #{my_wavelet_module_forward.1} parent=31 // pred_region
          %s547 = smul.u32 2, %s23
        $region48: #{my_wavelet_module_forward.1} parent=31 // pred_fallthru
          _
      $region32: #{my_wavelet_module_forward.1} parent=5 // pred_fallthru
        _
      %p548 = scmp.le.s32.totalorder 2, %s13
      // Predicated region
      $region49: #{my_wavelet_module_forward.1} parent=5 // pred_check
        %p549 = pneg %p548
      $region50: #{my_wavelet_module_forward.1} parent=5 // pred_check_branch
        %551 = sbr.rel (%p549) target = $region52
      $region51: #{my_wavelet_module_forward.1} parent=5 // pred_region
        %s552 = ssub.s32 %s13, 2
        // Predicated region
        $region53: #{my_wavelet_module_forward.1} parent=51 // pred_check
          %p553 = pneg %p126
        $region54: #{my_wavelet_module_forward.1} parent=51 // pred_check_branch
          %555 = sbr.rel (%p553) target = $region56
        $region55: #{my_wavelet_module_forward.1} parent=51 // pred_region
          %s556 = smul.u32 2, %s25
          %p557 = scmp.lt.s32.totalorder %s24, 1
          %s558 = scalar_select %p557, %s24, 1
          %p559 = scmp.lt.s32.totalorder %s556, 3
          %s560 = scalar_select %p559, %s556, 3
          %s561 = smul.addr %s560, 3
          %s562 = smul.addr %s558, 12
          %s563 = sadd.s32 %s561, %s562
          %s564 = smul.addr %s563, 8
          %s565 = scalar_lea.vmem %s3, %s564
        $region56: #{my_wavelet_module_forward.1} parent=51 // pred_fallthru
          _
      $region52: #{my_wavelet_module_forward.1} parent=5 // pred_fallthru
        _
    $region6: #{my_wavelet_module_forward.1} parent=1 // loop_footer
      %s17 = sadd.s32 1, %s13
    $region7: #{my_wavelet_module_forward.1} parent=1 // loop_footer_branch
      %12 = sbr.rel target = $region3
    $region8: #{my_wavelet_module_forward.1} parent=1 // loop_exit
      _
    %566 = vsyncpa [#allocation3], 1
    %s567 = scalar_lea.sflag [#allocation3], 1
    %568 = vsyncpa %s567, 1
    %569 = vsyncpa [#allocation5], 1

</llo_original>
